<compile_context>
chip_gen: v5e
topology: v5e:2x2
jax: 0.10.0
libtpu: 0.0.40
codegen_flags: <defaults>
</compile_context>

<pallas_src>
import math

import jax
import jax.numpy as jnp
from jax.experimental import pallas as pl
from jax.experimental.pallas import tpu as pltpu


def _pick_tile(n, preferred, multiple):
    """Largest divisor of n that is <= preferred and a multiple of `multiple`;
    falls back to n (the full extent is always a legal block)."""
    if n <= preferred:
        return n
    t = (preferred // multiple) * multiple
    while t >= multiple:
        if n % t == 0:
            return t
        t -= multiple
    return n


def _bpe_kernel_cmajor(interval_ref, w_ref, b_ref, arc_ref, out_ref):
    """Channel-major path (small d_model): out block (tb, 2H, tl), L on lanes."""
    H = arc_ref.shape[0]
    interval = interval_ref[...]                       # (tb, 1, tl)
    w = w_ref[...]                                     # (H, 1)
    b = b_ref[...]                                     # (H, 1)
    arc = arc_ref[...]                                 # (H, tl)
    phi = interval * w[None, :, :] + b[None, :, :]     # (tb, H, tl)
    theta = arc[None, :, :] + phi                      # (tb, H, tl)
    out_ref[:, :H, :] = jnp.sin(theta)                 # sin half -> channels [0:H]
    out_ref[:, H:, :] = jnp.cos(theta)                 # cos half -> channels [H:2H]


def _bpe_kernel_lmajor(interval_ref, w_ref, b_ref, arc_ref, out_ref):
    """Natural layout path (H % 128 == 0): out block (tb, tl, 2H)."""
    H = arc_ref.shape[1]
    interval = interval_ref[...]                       # (tb, tl, 1)
    w = w_ref[...]                                     # (1, H)
    b = b_ref[...]                                     # (1, H)
    arc = arc_ref[...]                                 # (tl, H)
    phi = interval * w[None, :, :] + b[None, :, :]     # (tb, tl, H)
    theta = arc[None, :, :] + phi                      # (tb, tl, H)
    out_ref[:, :, :H] = jnp.sin(theta)
    out_ref[:, :, H:] = jnp.cos(theta)


def biased_positional_embedding(x, interval, wt_weight, wt_bias, position, div_term):
    """Pallas wrapper reproducing BiasedPositionalEmbedding.forward(x, interval)."""
    interval = interval.astype(jnp.float32)
    # length comes from x (seq dim), exactly like the torch module.
    length = x.shape[1] if x.ndim > 1 else x.shape[0]

    H = div_term.shape[0]
    B, L = interval.shape
    assert L == length, "interval seq length must match x seq length"

    w_flat = wt_weight.reshape(H).astype(jnp.float32)            # Linear(1, H) weight
    b_flat = wt_bias.reshape(H).astype(jnp.float32)
    pos = position.reshape(-1)[:length].astype(jnp.float32)      # (L,)
    dv = div_term.astype(jnp.float32)                            # (H,)

    tb = _pick_tile(B, 8, 1)

    cost = pl.CostEstimate(
        flops=4 * B * L * H,                                     # mul + adds of the 1->H affine
        transcendentals=2 * B * L * H,                           # sin + cos
        bytes_accessed=4 * (B * L + 2 * H + L * H + B * L * 2 * H),
    )
    cparams = pltpu.CompilerParams(
        dimension_semantics=("parallel", "parallel"))

    if H % 128 == 0:
        # Natural (B, L, 2H) layout: each half-store is already lane-dense.
        tl = _pick_tile(L, 512, 8)
        arc = pos[:, None] * dv[None, :]                         # (L, H)
        pe = pl.pallas_call(
            _bpe_kernel_lmajor,
            out_shape=jax.ShapeDtypeStruct((B, L, 2 * H), jnp.float32),
            grid=(B // tb, L // tl),
            in_specs=[
                pl.BlockSpec((tb, tl, 1), lambda bi, li: (bi, li, 0)),   # interval (B,L,1)
                pl.BlockSpec((1, H), lambda bi, li: (0, 0)),             # w
                pl.BlockSpec((1, H), lambda bi, li: (0, 0)),             # b
                pl.BlockSpec((tl, H), lambda bi, li: (li, 0)),           # arc
            ],
            out_specs=pl.BlockSpec((tb, tl, 2 * H), lambda bi, li: (bi, li, 0)),
            compiler_params=cparams,
            cost_estimate=cost,
        )(interval.reshape(B, L, 1), w_flat.reshape(1, H), b_flat.reshape(1, H), arc)
        return pe

    # Small d_model: compute channel-major (B, 2H, L) so the lane axis (L) is
    # dense for every store, then fix layout in the wrapper.
    tl = _pick_tile(L, 512, 128)
    arc = dv[:, None] * pos[None, :]                             # (H, L)
    pe_cm = pl.pallas_call(
        _bpe_kernel_cmajor,
        out_shape=jax.ShapeDtypeStruct((B, 2 * H, L), jnp.float32),
        grid=(B // tb, L // tl),
        in_specs=[
            pl.BlockSpec((tb, 1, tl), lambda bi, li: (bi, 0, li)),       # interval (B,1,L)
            pl.BlockSpec((H, 1), lambda bi, li: (0, 0)),                 # w
            pl.BlockSpec((H, 1), lambda bi, li: (0, 0)),                 # b
            pl.BlockSpec((H, tl), lambda bi, li: (0, li)),               # arc
        ],
        out_specs=pl.BlockSpec((tb, 2 * H, tl), lambda bi, li: (bi, 0, li)),
        compiler_params=cparams,
        cost_estimate=cost,
    )(interval.reshape(B, 1, L), w_flat.reshape(H, 1), b_flat.reshape(H, 1), arc)
    return jnp.transpose(pe_cm, (0, 2, 1))                       # -> (B, L, 2H)


def _reference(x, interval, wt_weight, wt_bias, position, div_term):
    """Pure-JAX reference mirroring the torch forward."""
    interval = interval.astype(jnp.float32)
    length = x.shape[1] if x.ndim > 1 else x.shape[0]
    phi = interval[..., None] * wt_weight.reshape(-1)[None, None, :] + wt_bias[None, None, :]
    arc = (position[:length] * div_term)[None, :, :]
    return jnp.concatenate([jnp.sin(arc + phi), jnp.cos(arc + phi)], axis=-1)


if __name__ == "__main__":
    def _run_check(d_model, B, L, max_len, key):
        H = d_model // 2
        # Buffers exactly as in __init__.
        position = jnp.arange(0, max_len, dtype=jnp.float32)[:, None]              # (max_len, 1)
        div_term = jnp.exp(
            jnp.arange(0, d_model, 2, dtype=jnp.float32) * -(math.log(10000.0) / d_model)
        )                                                                            # (H,)

        # Deterministic synthetic parameters for Wt = nn.Linear(1, H).
        k_w, k_b, k_x, k_iv = jax.random.split(key, 4)
        bound = math.sqrt(6.0 / (1 + H))
        wt_weight = jax.random.uniform(k_w, (H, 1), jnp.float32, -bound, bound)
        wt_bias = jax.random.uniform(k_b, (H,), jnp.float32, -1.0, 1.0)

        # Example inputs: x only contributes its seq length; interval is [B, L].
        x = jax.random.randint(k_x, (B, L), 0, 100)
        interval = jax.random.randint(k_iv, (B, L), 0, 50).astype(jnp.float32)

        pe = biased_positional_embedding(x, interval, wt_weight, wt_bias, position, div_term)
        pe = jax.block_until_ready(pe)

        ref = _reference(x, interval, wt_weight, wt_bias, position, div_term)
        assert pe.shape == (B, L, d_model)
        assert jnp.allclose(pe, ref, atol=1e-5, rtol=1e-5)

    key = jax.random.PRNGKey(0)
    k1, k2 = jax.random.split(key)
    _run_check(d_model=32, B=2, L=8, max_len=64, key=k1)    # small d_model -> channel-major path
    _run_check(d_model=256, B=2, L=8, max_len=64, key=k2)   # H % 128 == 0 -> natural layout path

    print("KERNEL_OK")
</pallas_src>

<mosaic_0001>
module attributes {stable_mosaic.version = 11 : i64} {
  func.func @_bpe_kernel_cmajor(%arg0: i32, %arg1: i32, %arg2: memref<2x1x8xf32, #tpu.memory_space<vmem>>, %arg3: memref<16x1xf32, #tpu.memory_space<vmem>>, %arg4: memref<16x1xf32, #tpu.memory_space<vmem>>, %arg5: memref<16x8xf32, #tpu.memory_space<vmem>>, %arg6: memref<2x32x8xf32, #tpu.memory_space<vmem>>) attributes {dimension_semantics = [#tpu.dimension_semantics<parallel>, #tpu.dimension_semantics<parallel>], iteration_bounds = array<i64: 1, 1>, scalar_prefetch = 0 : i64, scratch_operands = 0 : i64, tpu.core_type = #tpu.core_type<tc>, window_params = [{transform_indices = @transform_0, window_bounds = array<i64: 2, 1, 8>}, {pipeline_mode = #tpu.pipeline_mode<synchronous>, transform_indices = @transform_1, window_bounds = array<i64: 16, 1>}, {pipeline_mode = #tpu.pipeline_mode<synchronous>, transform_indices = @transform_2, window_bounds = array<i64: 16, 1>}, {transform_indices = @transform_3, window_bounds = array<i64: 16, 8>}, {transform_indices = @transform_4, window_bounds = array<i64: 2, 32, 8>}]} {
    %c0 = arith.constant 0 : index
    %c0_0 = arith.constant 0 : index
    %c0_1 = arith.constant 0 : index
    %0 = vector.load %arg2[%c0, %c0_0, %c0_1] : memref<2x1x8xf32, #tpu.memory_space<vmem>>, vector<2x1x8xf32>
    %c0_2 = arith.constant 0 : index
    %c0_3 = arith.constant 0 : index
    %1 = vector.load %arg3[%c0_2, %c0_3] : memref<16x1xf32, #tpu.memory_space<vmem>>, vector<16x1xf32>
    %c0_4 = arith.constant 0 : index
    %c0_5 = arith.constant 0 : index
    %2 = vector.load %arg4[%c0_4, %c0_5] : memref<16x1xf32, #tpu.memory_space<vmem>>, vector<16x1xf32>
    %c0_6 = arith.constant 0 : index
    %c0_7 = arith.constant 0 : index
    %3 = vector.load %arg5[%c0_6, %c0_7] : memref<16x8xf32, #tpu.memory_space<vmem>>, vector<16x8xf32>
    %4 = vector.shape_cast %1 : vector<16x1xf32> to vector<1x16x1xf32>
    %5 = vector.broadcast %0 : vector<2x1x8xf32> to vector<2x16x8xf32>
    %6 = vector.broadcast %4 : vector<1x16x1xf32> to vector<2x16x8xf32>
    %7 = arith.mulf %5, %6 : vector<2x16x8xf32>
    %8 = vector.shape_cast %2 : vector<16x1xf32> to vector<1x16x1xf32>
    %9 = vector.broadcast %8 : vector<1x16x1xf32> to vector<2x16x8xf32>
    %10 = arith.addf %7, %9 : vector<2x16x8xf32>
    %11 = vector.shape_cast %3 : vector<16x8xf32> to vector<1x16x8xf32>
    %12 = vector.broadcast %11 : vector<1x16x8xf32> to vector<2x16x8xf32>
    %13 = arith.addf %12, %10 : vector<2x16x8xf32>
    %14 = math.sin %13 : vector<2x16x8xf32>
    %c0_8 = arith.constant 0 : index
    %c0_9 = arith.constant 0 : index
    %c0_10 = arith.constant 0 : index
    %15 = vector.load %arg6[%c0_8, %c0_9, %c0_10] : memref<2x32x8xf32, #tpu.memory_space<vmem>>, vector<2x16x8xf32>
    tpu.vector_store %arg6[%c0_8, %c0_9, %c0_10], %14 {strides = array<i32>} : memref<2x32x8xf32, #tpu.memory_space<vmem>>, vector<2x16x8xf32>,
    %16 = math.cos %13 : vector<2x16x8xf32>
    %c0_11 = arith.constant 0 : index
    %c16 = arith.constant 16 : index
    %c0_12 = arith.constant 0 : index
    %17 = vector.load %arg6[%c0_11, %c16, %c0_12] : memref<2x32x8xf32, #tpu.memory_space<vmem>>, vector<2x16x8xf32>
    tpu.vector_store %arg6[%c0_11, %c16, %c0_12], %16 {strides = array<i32>} : memref<2x32x8xf32, #tpu.memory_space<vmem>>, vector<2x16x8xf32>,
    return
  }
  func.func @transform_0(%arg0: i32, %arg1: i32) -> (i32, i32, i32) {
    %c0_i32 = arith.constant 0 : i32
    %c0_i32_0 = arith.constant 0 : i32
    return %arg0, %c0_i32, %arg1 : i32, i32, i32
  }
  func.func @transform_1(%arg0: i32, %arg1: i32) -> (i32, i32) {
    %c0_i32 = arith.constant 0 : i32
    %c0_i32_0 = arith.constant 0 : i32
    %c0_i32_1 = arith.constant 0 : i32
    return %c0_i32, %c0_i32_0 : i32, i32
  }
  func.func @transform_2(%arg0: i32, %arg1: i32) -> (i32, i32) {
    %c0_i32 = arith.constant 0 : i32
    %c0_i32_0 = arith.constant 0 : i32
    %c0_i32_1 = arith.constant 0 : i32
    return %c0_i32, %c0_i32_0 : i32, i32
  }
  func.func @transform_3(%arg0: i32, %arg1: i32) -> (i32, i32) {
    %c0_i32 = arith.constant 0 : i32
    %c0_i32_0 = arith.constant 0 : i32
    return %c0_i32, %arg1 : i32, i32
  }
  func.func @transform_4(%arg0: i32, %arg1: i32) -> (i32, i32, i32) {
    %c0_i32 = arith.constant 0 : i32
    %c0_i32_0 = arith.constant 0 : i32
    return %arg0, %c0_i32, %arg1 : i32, i32, i32
  }
}

</mosaic_0001>

<llo_original>
// kernel: tpu_custom_call.1
$region0: #{tpu_custom_call.1}
  #allocation0 [shape = 'u32[]', space=smem, size = 0x4, offset = 0x4, fixed_abs, tag = 'smem constant byte address 0x4 - core index']
  #allocation1 [shape = 'u32[72,128]{1,0:T(1,128)}', space=vmem, size = 0x9000, scoped, tag = 'internal scratch']
  %s0 = inlined_call_operand.vmem [shape: f32[2,1,8], index: 0, kind: input, shape index: {}]
  %s1 = inlined_call_operand.vmem [shape: f32[16,1], index: 1, kind: input, shape index: {}]
  %s2 = inlined_call_operand.vmem [shape: f32[16,1], index: 2, kind: input, shape index: {}]
  %s3 = inlined_call_operand.vmem [shape: f32[16,8], index: 3, kind: input, shape index: {}]
  %s4 = inlined_call_operand.vmem [shape: f32[2,32,8], index: 4, kind: output, shape index: {}]
  %s5 = sld [smem:[#allocation0]]
  $region26: #{tpu_custom_call.1} parent=0
    _
  %s7 = ssub.s32 1, %s5
  %s8 = scalar_select 0, %s7, %s5
  // Predicated region
  $region2: #{tpu_custom_call.1} parent=0 // pred_check
    _
  $region3: #{tpu_custom_call.1} parent=0 // pred_check_branch
    %10 = sbr.rel (0) target = $region5
  $region4: #{tpu_custom_call.1} parent=0 // pred_region
    _
  $region5: #{tpu_custom_call.1} parent=0 // pred_fallthru
    _
  // Predicated region
  $region6: #{tpu_custom_call.1} parent=0 // pred_check
    _
  $region7: #{tpu_custom_call.1} parent=0 // pred_check_branch
    %12 = sbr.rel (0) target = $region9
  $region8: #{tpu_custom_call.1} parent=0 // pred_region
    _
  $region9: #{tpu_custom_call.1} parent=0 // pred_fallthru
    _
  // Predicated region
  $region10: #{tpu_custom_call.1} parent=0 // pred_check
    _
  $region11: #{tpu_custom_call.1} parent=0 // pred_check_branch
    %14 = sbr.rel (0) target = $region13
  $region12: #{tpu_custom_call.1} parent=0 // pred_region
    _
  $region13: #{tpu_custom_call.1} parent=0 // pred_fallthru
    _
  // Predicated region
  $region14: #{tpu_custom_call.1} parent=0 // pred_check
    _
  $region15: #{tpu_custom_call.1} parent=0 // pred_check_branch
    %16 = sbr.rel (0) target = $region17
  $region16: #{tpu_custom_call.1} parent=0 // pred_region
    _
  $region17: #{tpu_custom_call.1} parent=0 // pred_fallthru
    _
  %v17 = vld [vmem:[%s0] sm:$0x1]
  %v18 = vld [vmem:[%s0 + $0x1] sm:$0x1]
  %v19 = vld [vmem:[%s1] sm:$0xff]
  %v20 = vld [vmem:[%s1 + $0x8] sm:$0xff]
  %v21 = vld [vmem:[%s2] sm:$0xff]
  %v22 = vld [vmem:[%s2 + $0x8] sm:$0xff]
  %v23 = vld [vmem:[%s3] sm:$0xff]
  %v24 = vld [vmem:[%s3 + $0x8] sm:$0xff]
  %v27 = vperm.slane %v17, 0
  %v28 = vperm.slane %v18, 0
  %32 = vset.pattern.permute.xlu0 0
  %33 = vperm.xlu0 %32, %v19
  %v34 = vpop.permute.xlu0 %33
  %37 = vset.pattern.permute.xlu0 0
  %38 = vperm.xlu0 %37, %v20
  %v39 = vpop.permute.xlu0 %38
  %v41 = vmul.f32 %v27, %v34
  %v42 = vmul.f32 %v27, %v39
  %v43 = vmul.f32 %v28, %v34
  %v44 = vmul.f32 %v28, %v39
  %46 = vset.pattern.permute.xlu0 0
  %47 = vperm.xlu0 %46, %v21
  %v48 = vpop.permute.xlu0 %47
  %51 = vset.pattern.permute.xlu0 0
  %52 = vperm.xlu0 %51, %v22
  %v53 = vpop.permute.xlu0 %52
  %v55 = vadd.f32 %v41, %v48
  %v56 = vadd.f32 %v42, %v53
  %v57 = vadd.f32 %v43, %v48
  %v58 = vadd.f32 %v44, %v53
  %v59 = vadd.f32 %v23, %v55
  %v60 = vadd.f32 %v24, %v56
  %v61 = vadd.f32 %v23, %v57
  %v62 = vadd.f32 %v24, %v58
  %v63 = vand.u32 2147483647, %v59
  %vm64 = vcmp.le.f32.partialorder %v63, 0.7853982
  %vm65 = vcmp.lt.s32.totalorder %v59, 0
  %v66 = vand.u32 %v59, 2139095040
  %v67 = vshrl.u32 %v66, 23
  %v68 = vsub.s32 %v67, 127
  %v69 = vand.u32 2147483647, %v59
  %v70 = vand.u32 %v69, 8388607
  %v71 = vor.u32 %v70, 8388608
  %v72 = vsub.s32 0, %v71
  %v73 = vadd.s32 %v68, 1
  %vm74 = vcmp.gt.s32.totalorder %v73, 0
  %v75 = vsel %vm74, %v73, 0
  %v76 = vshrl.u32 %v75, 5
  %v77 = vand.u32 %v75, 31
  %v78 = vsub.s32 32, %v77
  %v79 = vshrl.u32 683565275, %v78
  %v80 = vshll.u32 683565275, %v77
  %v81 = vshrl.u32 2475754826, %v78
  %v82 = vor.u32 %v80, %v81
  %v83 = vshll.u32 2475754826, %v77
  %v84 = vshrl.u32 2131351028, %v78
  %v85 = vor.u32 %v83, %v84
  %v86 = vshll.u32 2131351028, %v77
  %v87 = vshrl.u32 2102212464, %v78
  %v88 = vor.u32 %v86, %v87
  %v89 = vshll.u32 2102212464, %v77
  %v90 = vshrl.u32 920167782, %v78
  %v91 = vor.u32 %v89, %v90
  %v92 = vshll.u32 920167782, %v77
  %v93 = vshrl.u32 1326507024, %v78
  %v94 = vor.u32 %v92, %v93
  %vm95 = vcmp.lt.s32.totalorder %v76, 1
  %vm96 = vcmp.lt.s32.totalorder %v76, 2
  %vm97 = vcmp.lt.s32.totalorder %v76, 3
  %vm98 = vcmp.lt.s32.totalorder %v76, 4
  %v99 = vsel %vm95, %v79, %v82
  %v100 = vsel %vm98, %v88, 2102212464
  %v101 = vsel %vm97, %v85, %v100
  %v102 = vsel %vm96, %v99, %v101
  %v103 = vsel %vm95, %v82, %v85
  %v104 = vsel %vm98, %v91, 920167782
  %v105 = vsel %vm97, %v88, %v104
  %v106 = vsel %vm96, %v103, %v105
  %v107 = vsel %vm95, %v85, %v88
  %v108 = vsel %vm98, %v94, 1326507024
  %v109 = vsel %vm97, %v91, %v108
  %v110 = vsel %vm96, %v107, %v109
  %v111 = vshll.u32 %v71, 8
  %v112 = vand.u32 %v111, 65535
  %v113 = vshrl.u32 %v111, 16
  %v114 = vand.u32 %v110, 65535
  %v115 = vshrl.u32 %v110, 16
  %v116 = vmul.u32 %v112, %v114
  %v117 = vmul.u32 %v112, %v115
  %v118 = vmul.u32 %v113, %v114
  %v119 = vmul.u32 %v113, %v115
  %v120 = vshll.u32 %v117, 16
  %v121 = vshrl.u32 %v117, 16
  %v122 = vshll.u32 %v118, 16
  %v123 = vshrl.u32 %v118, 16
  %vm124 = vc.u32 %v116, %v120
  %v125 = vsel %vm124, 1, 0
  %v126 = vadd.s32 %v116, %v120
  %v127 = vadd.s32 %v119, %v125
  %vm128 = vc.u32 %v126, %v122
  %v129 = vsel %vm128, 1, 0
  %v130 = vadd.s32 %v126, %v122
  %v131 = vadd.s32 %v127, %v129
  %v132 = vadd.s32 %v131, %v121
  %v133 = vadd.s32 %v132, %v123
  %v134 = vand.u32 %v111, 65535
  %v135 = vshrl.u32 %v111, 16
  %v136 = vand.u32 %v106, 65535
  %v137 = vshrl.u32 %v106, 16
  %v138 = vmul.u32 %v134, %v136
  %v139 = vmul.u32 %v134, %v137
  %v140 = vmul.u32 %v135, %v136
  %v141 = vmul.u32 %v135, %v137
  %v142 = vshll.u32 %v139, 16
  %v143 = vshrl.u32 %v139, 16
  %v144 = vshll.u32 %v140, 16
  %v145 = vshrl.u32 %v140, 16
  %vm146 = vc.u32 %v138, %v142
  %v147 = vsel %vm146, 1, 0
  %v148 = vadd.s32 %v138, %v142
  %v149 = vadd.s32 %v141, %v147
  %vm150 = vc.u32 %v148, %v144
  %v151 = vsel %vm150, 1, 0
  %v152 = vadd.s32 %v148, %v144
  %v153 = vadd.s32 %v149, %v151
  %v154 = vadd.s32 %v153, %v143
  %v155 = vadd.s32 %v154, %v145
  %v156 = vmul.u32 %v111, %v102
  %v157 = vadd.s32 %v133, %v152
  %vm158 = vc.u32 %v133, %v152
  %v159 = vadd.s32 %v155, 1
  %v160 = vsel %vm158, %v159, %v155
  %v161 = vadd.s32 %v156, %v160
  %v162 = vadd.s32 %v161, 536870912
  %v163 = vshrl.u32 %v162, 30
  %v164 = vshll.u32 %v163, 30
  %v165 = vsub.s32 %v161, %v164
  %vm166 = vcmp.lt.s32.totalorder %v165, 0
  %v167 = vsub.s32 0, %v165
  %v168 = vsel %vm166, %v167, %v165
  %v169 = vclz %v168
  %v170 = vsub.s32 %v169, 2
  %vm171 = vcmp.gt.s32.totalorder 0, %v170
  %v172 = vsel %vm171, 0, %v170
  %v173 = vsub.s32 32, %v172
  %v174 = vshll.u32 %v165, %v172
  %v175 = vshrl.u32 %v157, %v173
  %v176 = vor.u32 %v174, %v175
  %v177 = vsub.s32 4294967266, %v172
  %v178 = vadd.s32 %v177, 127
  %v179 = vshll.u32 %v178, 23
  %v180 = vor.u32 4788187, %v179
  %v181 = vand.u32 2147483647, %v180
  %v183 = vcvt.s32.f32 %v176
  %v184 = vmul.f32 %v183, %v181
  %v185 = vxor.u32 %v184, 2147483648
  %v186 = vsel %vm65, %v185, %v184
  %v187 = vsub.s32 4, %v163
  %v188 = vsel %vm65, %v187, %v163
  %v189 = vsel %vm64, %v59, %v186
  %v190 = vsel %vm64, 0, %v188
  %v191 = vmul.f32 %v189, %v189
  %v192 = vmul.f32 %v191, -0.001358992
  %v193 = vadd.f32 %v192, 0.041655596
  %v194 = vmul.f32 %v191, %v193
  %v195 = vadd.f32 %v194, -0.4999988
  %v196 = vmul.f32 %v191, %v195
  %v197 = vadd.f32 1.0, %v196
  %v198 = vmul.f32 %v189, %v189
  %v199 = vmul.f32 %v198, -0.00019511016
  %v200 = vadd.f32 %v199, 0.008332121
  %v201 = vmul.f32 %v198, %v200
  %v202 = vadd.f32 %v201, -0.16666654
  %v203 = vmul.f32 %v198, %v202
  %v204 = vadd.f32 %v203, 1.0
  %v205 = vmul.f32 %v204, %v189
  %vm206 = vweird.f32 %v59
  %v207 = vadd.s32 %v190, 3
  %v208 = vand.u32 %v207, 3
  %vm209 = vcmp.lt.s32.totalorder %v208, 2
  %vm210 = vcmp.eq.s32.totalorder %v208, 0
  %v211 = vxor.u32 %v205, 2147483648
  %v212 = vsel %vm210, %v197, %v211
  %vm213 = vcmp.eq.s32.totalorder %v208, 2
  %v214 = vxor.u32 %v197, 2147483648
  %v215 = vsel %vm213, %v214, %v205
  %v216 = vsel %vm209, %v212, %v215
  %v217 = vsel %vm206, nan, %v216
  %v218 = vand.u32 2147483647, %v60
  %vm219 = vcmp.le.f32.partialorder %v218, 0.7853982
  %vm220 = vcmp.lt.s32.totalorder %v60, 0
  %v221 = vand.u32 %v60, 2139095040
  %v222 = vshrl.u32 %v221, 23
  %v223 = vsub.s32 %v222, 127
  %v224 = vand.u32 2147483647, %v60
  %v225 = vand.u32 %v224, 8388607
  %v226 = vor.u32 %v225, 8388608
  %v227 = vsub.s32 0, %v226
  %v228 = vadd.s32 %v223, 1
  %vm229 = vcmp.gt.s32.totalorder %v228, 0
  %v230 = vsel %vm229, %v228, 0
  %v231 = vshrl.u32 %v230, 5
  %v232 = vand.u32 %v230, 31
  %v233 = vsub.s32 32, %v232
  %v234 = vshrl.u32 683565275, %v233
  %v235 = vshll.u32 683565275, %v232
  %v236 = vshrl.u32 2475754826, %v233
  %v237 = vor.u32 %v235, %v236
  %v238 = vshll.u32 2475754826, %v232
  %v239 = vshrl.u32 2131351028, %v233
  %v240 = vor.u32 %v238, %v239
  %v241 = vshll.u32 2131351028, %v232
  %v242 = vshrl.u32 2102212464, %v233
  %v243 = vor.u32 %v241, %v242
  %v244 = vshll.u32 2102212464, %v232
  %v245 = vshrl.u32 920167782, %v233
  %v246 = vor.u32 %v244, %v245
  %v247 = vshll.u32 920167782, %v232
  %v248 = vshrl.u32 1326507024, %v233
  %v249 = vor.u32 %v247, %v248
  %vm250 = vcmp.lt.s32.totalorder %v231, 1
  %vm251 = vcmp.lt.s32.totalorder %v231, 2
  %vm252 = vcmp.lt.s32.totalorder %v231, 3
  %vm253 = vcmp.lt.s32.totalorder %v231, 4
  %v254 = vsel %vm250, %v234, %v237
  %v255 = vsel %vm253, %v243, 2102212464
  %v256 = vsel %vm252, %v240, %v255
  %v257 = vsel %vm251, %v254, %v256
  %v258 = vsel %vm250, %v237, %v240
  %v259 = vsel %vm253, %v246, 920167782
  %v260 = vsel %vm252, %v243, %v259
  %v261 = vsel %vm251, %v258, %v260
  %v262 = vsel %vm250, %v240, %v243
  %v263 = vsel %vm253, %v249, 1326507024
  %v264 = vsel %vm252, %v246, %v263
  %v265 = vsel %vm251, %v262, %v264
  %v266 = vshll.u32 %v226, 8
  %v267 = vand.u32 %v266, 65535
  %v268 = vshrl.u32 %v266, 16
  %v269 = vand.u32 %v265, 65535
  %v270 = vshrl.u32 %v265, 16
  %v271 = vmul.u32 %v267, %v269
  %v272 = vmul.u32 %v267, %v270
  %v273 = vmul.u32 %v268, %v269
  %v274 = vmul.u32 %v268, %v270
  %v275 = vshll.u32 %v272, 16
  %v276 = vshrl.u32 %v272, 16
  %v277 = vshll.u32 %v273, 16
  %v278 = vshrl.u32 %v273, 16
  %vm279 = vc.u32 %v271, %v275
  %v280 = vsel %vm279, 1, 0
  %v281 = vadd.s32 %v271, %v275
  %v282 = vadd.s32 %v274, %v280
  %vm283 = vc.u32 %v281, %v277
  %v284 = vsel %vm283, 1, 0
  %v285 = vadd.s32 %v281, %v277
  %v286 = vadd.s32 %v282, %v284
  %v287 = vadd.s32 %v286, %v276
  %v288 = vadd.s32 %v287, %v278
  %v289 = vand.u32 %v266, 65535
  %v290 = vshrl.u32 %v266, 16
  %v291 = vand.u32 %v261, 65535
  %v292 = vshrl.u32 %v261, 16
  %v293 = vmul.u32 %v289, %v291
  %v294 = vmul.u32 %v289, %v292
  %v295 = vmul.u32 %v290, %v291
  %v296 = vmul.u32 %v290, %v292
  %v297 = vshll.u32 %v294, 16
  %v298 = vshrl.u32 %v294, 16
  %v299 = vshll.u32 %v295, 16
  %v300 = vshrl.u32 %v295, 16
  %vm301 = vc.u32 %v293, %v297
  %v302 = vsel %vm301, 1, 0
  %v303 = vadd.s32 %v293, %v297
  %v304 = vadd.s32 %v296, %v302
  %vm305 = vc.u32 %v303, %v299
  %v306 = vsel %vm305, 1, 0
  %v307 = vadd.s32 %v303, %v299
  %v308 = vadd.s32 %v304, %v306
  %v309 = vadd.s32 %v308, %v298
  %v310 = vadd.s32 %v309, %v300
  %v311 = vmul.u32 %v266, %v257
  %v312 = vadd.s32 %v288, %v307
  %vm313 = vc.u32 %v288, %v307
  %v314 = vadd.s32 %v310, 1
  %v315 = vsel %vm313, %v314, %v310
  %v316 = vadd.s32 %v311, %v315
  %v317 = vadd.s32 %v316, 536870912
  %v318 = vshrl.u32 %v317, 30
  %v319 = vshll.u32 %v318, 30
  %v320 = vsub.s32 %v316, %v319
  %vm321 = vcmp.lt.s32.totalorder %v320, 0
  %v322 = vsub.s32 0, %v320
  %v323 = vsel %vm321, %v322, %v320
  %v324 = vclz %v323
  %v325 = vsub.s32 %v324, 2
  %vm326 = vcmp.gt.s32.totalorder 0, %v325
  %v327 = vsel %vm326, 0, %v325
  %v328 = vsub.s32 32, %v327
  %v329 = vshll.u32 %v320, %v327
  %v330 = vshrl.u32 %v312, %v328
  %v331 = vor.u32 %v329, %v330
  %v332 = vsub.s32 4294967266, %v327
  %v333 = vadd.s32 %v332, 127
  %v334 = vshll.u32 %v333, 23
  %v335 = vor.u32 4788187, %v334
  %v336 = vand.u32 2147483647, %v335
  %v338 = vcvt.s32.f32 %v331
  %v339 = vmul.f32 %v338, %v336
  %v340 = vxor.u32 %v339, 2147483648
  %v341 = vsel %vm220, %v340, %v339
  %v342 = vsub.s32 4, %v318
  %v343 = vsel %vm220, %v342, %v318
  %v344 = vsel %vm219, %v60, %v341
  %v345 = vsel %vm219, 0, %v343
  %v346 = vmul.f32 %v344, %v344
  %v347 = vmul.f32 %v346, -0.001358992
  %v348 = vadd.f32 %v347, 0.041655596
  %v349 = vmul.f32 %v346, %v348
  %v350 = vadd.f32 %v349, -0.4999988
  %v351 = vmul.f32 %v346, %v350
  %v352 = vadd.f32 1.0, %v351
  %v353 = vmul.f32 %v344, %v344
  %v354 = vmul.f32 %v353, -0.00019511016
  %v355 = vadd.f32 %v354, 0.008332121
  %v356 = vmul.f32 %v353, %v355
  %v357 = vadd.f32 %v356, -0.16666654
  %v358 = vmul.f32 %v353, %v357
  %v359 = vadd.f32 %v358, 1.0
  %v360 = vmul.f32 %v359, %v344
  %vm361 = vweird.f32 %v60
  %v362 = vadd.s32 %v345, 3
  %v363 = vand.u32 %v362, 3
  %vm364 = vcmp.lt.s32.totalorder %v363, 2
  %vm365 = vcmp.eq.s32.totalorder %v363, 0
  %v366 = vxor.u32 %v360, 2147483648
  %v367 = vsel %vm365, %v352, %v366
  %vm368 = vcmp.eq.s32.totalorder %v363, 2
  %v369 = vxor.u32 %v352, 2147483648
  %v370 = vsel %vm368, %v369, %v360
  %v371 = vsel %vm364, %v367, %v370
  %v372 = vsel %vm361, nan, %v371
  %v373 = vand.u32 2147483647, %v61
  %vm374 = vcmp.le.f32.partialorder %v373, 0.7853982
  %vm375 = vcmp.lt.s32.totalorder %v61, 0
  %v376 = vand.u32 %v61, 2139095040
  %v377 = vshrl.u32 %v376, 23
  %v378 = vsub.s32 %v377, 127
  %v379 = vand.u32 2147483647, %v61
  %v380 = vand.u32 %v379, 8388607
  %v381 = vor.u32 %v380, 8388608
  %v382 = vsub.s32 0, %v381
  %v383 = vadd.s32 %v378, 1
  %vm384 = vcmp.gt.s32.totalorder %v383, 0
  %v385 = vsel %vm384, %v383, 0
  %v386 = vshrl.u32 %v385, 5
  %v387 = vand.u32 %v385, 31
  %v388 = vsub.s32 32, %v387
  %v389 = vshrl.u32 683565275, %v388
  %v390 = vshll.u32 683565275, %v387
  %v391 = vshrl.u32 2475754826, %v388
  %v392 = vor.u32 %v390, %v391
  %v393 = vshll.u32 2475754826, %v387
  %v394 = vshrl.u32 2131351028, %v388
  %v395 = vor.u32 %v393, %v394
  %v396 = vshll.u32 2131351028, %v387
  %v397 = vshrl.u32 2102212464, %v388
  %v398 = vor.u32 %v396, %v397
  %v399 = vshll.u32 2102212464, %v387
  %v400 = vshrl.u32 920167782, %v388
  %v401 = vor.u32 %v399, %v400
  %v402 = vshll.u32 920167782, %v387
  %v403 = vshrl.u32 1326507024, %v388
  %v404 = vor.u32 %v402, %v403
  %vm405 = vcmp.lt.s32.totalorder %v386, 1
  %vm406 = vcmp.lt.s32.totalorder %v386, 2
  %vm407 = vcmp.lt.s32.totalorder %v386, 3
  %vm408 = vcmp.lt.s32.totalorder %v386, 4
  %v409 = vsel %vm405, %v389, %v392
  %v410 = vsel %vm408, %v398, 2102212464
  %v411 = vsel %vm407, %v395, %v410
  %v412 = vsel %vm406, %v409, %v411
  %v413 = vsel %vm405, %v392, %v395
  %v414 = vsel %vm408, %v401, 920167782
  %v415 = vsel %vm407, %v398, %v414
  %v416 = vsel %vm406, %v413, %v415
  %v417 = vsel %vm405, %v395, %v398
  %v418 = vsel %vm408, %v404, 1326507024
  %v419 = vsel %vm407, %v401, %v418
  %v420 = vsel %vm406, %v417, %v419
  %v421 = vshll.u32 %v381, 8
  %v422 = vand.u32 %v421, 65535
  %v423 = vshrl.u32 %v421, 16
  %v424 = vand.u32 %v420, 65535
  %v425 = vshrl.u32 %v420, 16
  %v426 = vmul.u32 %v422, %v424
  %v427 = vmul.u32 %v422, %v425
  %v428 = vmul.u32 %v423, %v424
  %v429 = vmul.u32 %v423, %v425
  %v430 = vshll.u32 %v427, 16
  %v431 = vshrl.u32 %v427, 16
  %v432 = vshll.u32 %v428, 16
  %v433 = vshrl.u32 %v428, 16
  %vm434 = vc.u32 %v426, %v430
  %v435 = vsel %vm434, 1, 0
  %v436 = vadd.s32 %v426, %v430
  %v437 = vadd.s32 %v429, %v435
  %vm438 = vc.u32 %v436, %v432
  %v439 = vsel %vm438, 1, 0
  %v440 = vadd.s32 %v436, %v432
  %v441 = vadd.s32 %v437, %v439
  %v442 = vadd.s32 %v441, %v431
  %v443 = vadd.s32 %v442, %v433
  %v444 = vand.u32 %v421, 65535
  %v445 = vshrl.u32 %v421, 16
  %v446 = vand.u32 %v416, 65535
  %v447 = vshrl.u32 %v416, 16
  %v448 = vmul.u32 %v444, %v446
  %v449 = vmul.u32 %v444, %v447
  %v450 = vmul.u32 %v445, %v446
  %v451 = vmul.u32 %v445, %v447
  %v452 = vshll.u32 %v449, 16
  %v453 = vshrl.u32 %v449, 16
  %v454 = vshll.u32 %v450, 16
  %v455 = vshrl.u32 %v450, 16
  %vm456 = vc.u32 %v448, %v452
  %v457 = vsel %vm456, 1, 0
  %v458 = vadd.s32 %v448, %v452
  %v459 = vadd.s32 %v451, %v457
  %vm460 = vc.u32 %v458, %v454
  %v461 = vsel %vm460, 1, 0
  %v462 = vadd.s32 %v458, %v454
  %v463 = vadd.s32 %v459, %v461
  %v464 = vadd.s32 %v463, %v453
  %v465 = vadd.s32 %v464, %v455
  %v466 = vmul.u32 %v421, %v412
  %v467 = vadd.s32 %v443, %v462
  %vm468 = vc.u32 %v443, %v462
  %v469 = vadd.s32 %v465, 1
  %v470 = vsel %vm468, %v469, %v465
  %v471 = vadd.s32 %v466, %v470
  %v472 = vadd.s32 %v471, 536870912
  %v473 = vshrl.u32 %v472, 30
  %v474 = vshll.u32 %v473, 30
  %v475 = vsub.s32 %v471, %v474
  %vm476 = vcmp.lt.s32.totalorder %v475, 0
  %v477 = vsub.s32 0, %v475
  %v478 = vsel %vm476, %v477, %v475
  %v479 = vclz %v478
  %v480 = vsub.s32 %v479, 2
  %vm481 = vcmp.gt.s32.totalorder 0, %v480
  %v482 = vsel %vm481, 0, %v480
  %v483 = vsub.s32 32, %v482
  %v484 = vshll.u32 %v475, %v482
  %v485 = vshrl.u32 %v467, %v483
  %v486 = vor.u32 %v484, %v485
  %v487 = vsub.s32 4294967266, %v482
  %v488 = vadd.s32 %v487, 127
  %v489 = vshll.u32 %v488, 23
  %v490 = vor.u32 4788187, %v489
  %v491 = vand.u32 2147483647, %v490
  %v493 = vcvt.s32.f32 %v486
  %v494 = vmul.f32 %v493, %v491
  %v495 = vxor.u32 %v494, 2147483648
  %v496 = vsel %vm375, %v495, %v494
  %v497 = vsub.s32 4, %v473
  %v498 = vsel %vm375, %v497, %v473
  %v499 = vsel %vm374, %v61, %v496
  %v500 = vsel %vm374, 0, %v498
  %v501 = vmul.f32 %v499, %v499
  %v502 = vmul.f32 %v501, -0.001358992
  %v503 = vadd.f32 %v502, 0.041655596
  %v504 = vmul.f32 %v501, %v503
  %v505 = vadd.f32 %v504, -0.4999988
  %v506 = vmul.f32 %v501, %v505
  %v507 = vadd.f32 1.0, %v506
  %v508 = vmul.f32 %v499, %v499
  %v509 = vmul.f32 %v508, -0.00019511016
  %v510 = vadd.f32 %v509, 0.008332121
  %v511 = vmul.f32 %v508, %v510
  %v512 = vadd.f32 %v511, -0.16666654
  %v513 = vmul.f32 %v508, %v512
  %v514 = vadd.f32 %v513, 1.0
  %v515 = vmul.f32 %v514, %v499
  %vm516 = vweird.f32 %v61
  %v517 = vadd.s32 %v500, 3
  %v518 = vand.u32 %v517, 3
  %vm519 = vcmp.lt.s32.totalorder %v518, 2
  %vm520 = vcmp.eq.s32.totalorder %v518, 0
  %v521 = vxor.u32 %v515, 2147483648
  %v522 = vsel %vm520, %v507, %v521
  %vm523 = vcmp.eq.s32.totalorder %v518, 2
  %v524 = vxor.u32 %v507, 2147483648
  %v525 = vsel %vm523, %v524, %v515
  %v526 = vsel %vm519, %v522, %v525
  %v527 = vsel %vm516, nan, %v526
  %v528 = vand.u32 2147483647, %v62
  %vm529 = vcmp.le.f32.partialorder %v528, 0.7853982
  %vm530 = vcmp.lt.s32.totalorder %v62, 0
  %v531 = vand.u32 %v62, 2139095040
  %v532 = vshrl.u32 %v531, 23
  %v533 = vsub.s32 %v532, 127
  %v534 = vand.u32 2147483647, %v62
  %v535 = vand.u32 %v534, 8388607
  %v536 = vor.u32 %v535, 8388608
  %v537 = vsub.s32 0, %v536
  %v538 = vadd.s32 %v533, 1
  %vm539 = vcmp.gt.s32.totalorder %v538, 0
  %v540 = vsel %vm539, %v538, 0
  %v541 = vshrl.u32 %v540, 5
  %v542 = vand.u32 %v540, 31
  %v543 = vsub.s32 32, %v542
  %v544 = vshrl.u32 683565275, %v543
  %v545 = vshll.u32 683565275, %v542
  %v546 = vshrl.u32 2475754826, %v543
  %v547 = vor.u32 %v545, %v546
  %v548 = vshll.u32 2475754826, %v542
  %v549 = vshrl.u32 2131351028, %v543
  %v550 = vor.u32 %v548, %v549
  %v551 = vshll.u32 2131351028, %v542
  %v552 = vshrl.u32 2102212464, %v543
  %v553 = vor.u32 %v551, %v552
  %v554 = vshll.u32 2102212464, %v542
  %v555 = vshrl.u32 920167782, %v543
  %v556 = vor.u32 %v554, %v555
  %v557 = vshll.u32 920167782, %v542
  %v558 = vshrl.u32 1326507024, %v543
  %v559 = vor.u32 %v557, %v558
  %vm560 = vcmp.lt.s32.totalorder %v541, 1
  %vm561 = vcmp.lt.s32.totalorder %v541, 2
  %vm562 = vcmp.lt.s32.totalorder %v541, 3
  %vm563 = vcmp.lt.s32.totalorder %v541, 4
  %v564 = vsel %vm560, %v544, %v547
  %v565 = vsel %vm563, %v553, 2102212464
  %v566 = vsel %vm562, %v550, %v565
  %v567 = vsel %vm561, %v564, %v566
  %v568 = vsel %vm560, %v547, %v550
  %v569 = vsel %vm563, %v556, 920167782
  %v570 = vsel %vm562, %v553, %v569
  %v571 = vsel %vm561, %v568, %v570
  %v572 = vsel %vm560, %v550, %v553
  %v573 = vsel %vm563, %v559, 1326507024
  %v574 = vsel %vm562, %v556, %v573
  %v575 = vsel %vm561, %v572, %v574
  %v576 = vshll.u32 %v536, 8
  %v577 = vand.u32 %v576, 65535
  %v578 = vshrl.u32 %v576, 16
  %v579 = vand.u32 %v575, 65535
  %v580 = vshrl.u32 %v575, 16
  %v581 = vmul.u32 %v577, %v579
  %v582 = vmul.u32 %v577, %v580
  %v583 = vmul.u32 %v578, %v579
  %v584 = vmul.u32 %v578, %v580
  %v585 = vshll.u32 %v582, 16
  %v586 = vshrl.u32 %v582, 16
  %v587 = vshll.u32 %v583, 16
  %v588 = vshrl.u32 %v583, 16
  %vm589 = vc.u32 %v581, %v585
  %v590 = vsel %vm589, 1, 0
  %v591 = vadd.s32 %v581, %v585
  %v592 = vadd.s32 %v584, %v590
  %vm593 = vc.u32 %v591, %v587
  %v594 = vsel %vm593, 1, 0
  %v595 = vadd.s32 %v591, %v587
  %v596 = vadd.s32 %v592, %v594
  %v597 = vadd.s32 %v596, %v586
  %v598 = vadd.s32 %v597, %v588
  %v599 = vand.u32 %v576, 65535
  %v600 = vshrl.u32 %v576, 16
  %v601 = vand.u32 %v571, 65535
  %v602 = vshrl.u32 %v571, 16
  %v603 = vmul.u32 %v599, %v601
  %v604 = vmul.u32 %v599, %v602
  %v605 = vmul.u32 %v600, %v601
  %v606 = vmul.u32 %v600, %v602
  %v607 = vshll.u32 %v604, 16
  %v608 = vshrl.u32 %v604, 16
  %v609 = vshll.u32 %v605, 16
  %v610 = vshrl.u32 %v605, 16
  %vm611 = vc.u32 %v603, %v607
  %v612 = vsel %vm611, 1, 0
  %v613 = vadd.s32 %v603, %v607
  %v614 = vadd.s32 %v606, %v612
  %vm615 = vc.u32 %v613, %v609
  %v616 = vsel %vm615, 1, 0
  %v617 = vadd.s32 %v613, %v609
  %v618 = vadd.s32 %v614, %v616
  %v619 = vadd.s32 %v618, %v608
  %v620 = vadd.s32 %v619, %v610
  %v621 = vmul.u32 %v576, %v567
  %v622 = vadd.s32 %v598, %v617
  %vm623 = vc.u32 %v598, %v617
  %v624 = vadd.s32 %v620, 1
  %v625 = vsel %vm623, %v624, %v620
  %v626 = vadd.s32 %v621, %v625
  %v627 = vadd.s32 %v626, 536870912
  %v628 = vshrl.u32 %v627, 30
  %v629 = vshll.u32 %v628, 30
  %v630 = vsub.s32 %v626, %v629
  %vm631 = vcmp.lt.s32.totalorder %v630, 0
  %v632 = vsub.s32 0, %v630
  %v633 = vsel %vm631, %v632, %v630
  %v634 = vclz %v633
  %v635 = vsub.s32 %v634, 2
  %vm636 = vcmp.gt.s32.totalorder 0, %v635
  %v637 = vsel %vm636, 0, %v635
  %v638 = vsub.s32 32, %v637
  %v639 = vshll.u32 %v630, %v637
  %v640 = vshrl.u32 %v622, %v638
  %v641 = vor.u32 %v639, %v640
  %v642 = vsub.s32 4294967266, %v637
  %v643 = vadd.s32 %v642, 127
  %v644 = vshll.u32 %v643, 23
  %v645 = vor.u32 4788187, %v644
  %v646 = vand.u32 2147483647, %v645
  %v648 = vcvt.s32.f32 %v641
  %v649 = vmul.f32 %v648, %v646
  %v650 = vxor.u32 %v649, 2147483648
  %v651 = vsel %vm530, %v650, %v649
  %v652 = vsub.s32 4, %v628
  %v653 = vsel %vm530, %v652, %v628
  %v654 = vsel %vm529, %v62, %v651
  %v655 = vsel %vm529, 0, %v653
  %v656 = vmul.f32 %v654, %v654
  %v657 = vmul.f32 %v656, -0.001358992
  %v658 = vadd.f32 %v657, 0.041655596
  %v659 = vmul.f32 %v656, %v658
  %v660 = vadd.f32 %v659, -0.4999988
  %v661 = vmul.f32 %v656, %v660
  %v662 = vadd.f32 1.0, %v661
  %v663 = vmul.f32 %v654, %v654
  %v664 = vmul.f32 %v663, -0.00019511016
  %v665 = vadd.f32 %v664, 0.008332121
  %v666 = vmul.f32 %v663, %v665
  %v667 = vadd.f32 %v666, -0.16666654
  %v668 = vmul.f32 %v663, %v667
  %v669 = vadd.f32 %v668, 1.0
  %v670 = vmul.f32 %v669, %v654
  %vm671 = vweird.f32 %v62
  %v672 = vadd.s32 %v655, 3
  %v673 = vand.u32 %v672, 3
  %vm674 = vcmp.lt.s32.totalorder %v673, 2
  %vm675 = vcmp.eq.s32.totalorder %v673, 0
  %v676 = vxor.u32 %v670, 2147483648
  %v677 = vsel %vm675, %v662, %v676
  %vm678 = vcmp.eq.s32.totalorder %v673, 2
  %v679 = vxor.u32 %v662, 2147483648
  %v680 = vsel %vm678, %v679, %v670
  %v681 = vsel %vm674, %v677, %v680
  %v682 = vsel %vm671, nan, %v681
  %vm683 = vcmask 64512
  %684 = vst.msk [vmem:[%s4] sm:$0xff] %vm683, %v217
  %685 = vst.msk [vmem:[%s4 + $0x8] sm:$0xff] %vm683, %v372
  %686 = vst.msk [vmem:[%s4 + $0x20] sm:$0xff] %vm683, %v527
  %687 = vst.msk [vmem:[%s4 + $0x28] sm:$0xff] %vm683, %v682
  %v688 = vand.u32 2147483647, %v59
  %vm689 = vcmp.le.f32.partialorder %v688, 0.7853982
  %vm690 = vcmp.lt.s32.totalorder %v59, 0
  %v691 = vand.u32 %v59, 2139095040
  %v692 = vshrl.u32 %v691, 23
  %v693 = vsub.s32 %v692, 127
  %v694 = vand.u32 2147483647, %v59
  %v695 = vand.u32 %v694, 8388607
  %v696 = vor.u32 %v695, 8388608
  %v697 = vsub.s32 0, %v696
  %v698 = vadd.s32 %v693, 1
  %vm699 = vcmp.gt.s32.totalorder %v698, 0
  %v700 = vsel %vm699, %v698, 0
  %v701 = vshrl.u32 %v700, 5
  %v702 = vand.u32 %v700, 31
  %v703 = vsub.s32 32, %v702
  %v704 = vshrl.u32 683565275, %v703
  %v705 = vshll.u32 683565275, %v702
  %v706 = vshrl.u32 2475754826, %v703
  %v707 = vor.u32 %v705, %v706
  %v708 = vshll.u32 2475754826, %v702
  %v709 = vshrl.u32 2131351028, %v703
  %v710 = vor.u32 %v708, %v709
  %v711 = vshll.u32 2131351028, %v702
  %v712 = vshrl.u32 2102212464, %v703
  %v713 = vor.u32 %v711, %v712
  %v714 = vshll.u32 2102212464, %v702
  %v715 = vshrl.u32 920167782, %v703
  %v716 = vor.u32 %v714, %v715
  %v717 = vshll.u32 920167782, %v702
  %v718 = vshrl.u32 1326507024, %v703
  %v719 = vor.u32 %v717, %v718
  %vm720 = vcmp.lt.s32.totalorder %v701, 1
  %vm721 = vcmp.lt.s32.totalorder %v701, 2
  %vm722 = vcmp.lt.s32.totalorder %v701, 3
  %vm723 = vcmp.lt.s32.totalorder %v701, 4
  %v724 = vsel %vm720, %v704, %v707
  %v725 = vsel %vm723, %v713, 2102212464
  %v726 = vsel %vm722, %v710, %v725
  %v727 = vsel %vm721, %v724, %v726
  %v728 = vsel %vm720, %v707, %v710
  %v729 = vsel %vm723, %v716, 920167782
  %v730 = vsel %vm722, %v713, %v729
  %v731 = vsel %vm721, %v728, %v730
  %v732 = vsel %vm720, %v710, %v713
  %v733 = vsel %vm723, %v719, 1326507024
  %v734 = vsel %vm722, %v716, %v733
  %v735 = vsel %vm721, %v732, %v734
  %v736 = vshll.u32 %v696, 8
  %v737 = vand.u32 %v736, 65535
  %v738 = vshrl.u32 %v736, 16
  %v739 = vand.u32 %v735, 65535
  %v740 = vshrl.u32 %v735, 16
  %v741 = vmul.u32 %v737, %v739
  %v742 = vmul.u32 %v737, %v740
  %v743 = vmul.u32 %v738, %v739
  %v744 = vmul.u32 %v738, %v740
  %v745 = vshll.u32 %v742, 16
  %v746 = vshrl.u32 %v742, 16
  %v747 = vshll.u32 %v743, 16
  %v748 = vshrl.u32 %v743, 16
  %vm749 = vc.u32 %v741, %v745
  %v750 = vsel %vm749, 1, 0
  %v751 = vadd.s32 %v741, %v745
  %v752 = vadd.s32 %v744, %v750
  %vm753 = vc.u32 %v751, %v747
  %v754 = vsel %vm753, 1, 0
  %v755 = vadd.s32 %v751, %v747
  %v756 = vadd.s32 %v752, %v754
  %v757 = vadd.s32 %v756, %v746
  %v758 = vadd.s32 %v757, %v748
  %v759 = vand.u32 %v736, 65535
  %v760 = vshrl.u32 %v736, 16
  %v761 = vand.u32 %v731, 65535
  %v762 = vshrl.u32 %v731, 16
  %v763 = vmul.u32 %v759, %v761
  %v764 = vmul.u32 %v759, %v762
  %v765 = vmul.u32 %v760, %v761
  %v766 = vmul.u32 %v760, %v762
  %v767 = vshll.u32 %v764, 16
  %v768 = vshrl.u32 %v764, 16
  %v769 = vshll.u32 %v765, 16
  %v770 = vshrl.u32 %v765, 16
  %vm771 = vc.u32 %v763, %v767
  %v772 = vsel %vm771, 1, 0
  %v773 = vadd.s32 %v763, %v767
  %v774 = vadd.s32 %v766, %v772
  %vm775 = vc.u32 %v773, %v769
  %v776 = vsel %vm775, 1, 0
  %v777 = vadd.s32 %v773, %v769
  %v778 = vadd.s32 %v774, %v776
  %v779 = vadd.s32 %v778, %v768
  %v780 = vadd.s32 %v779, %v770
  %v781 = vmul.u32 %v736, %v727
  %v782 = vadd.s32 %v758, %v777
  %vm783 = vc.u32 %v758, %v777
  %v784 = vadd.s32 %v780, 1
  %v785 = vsel %vm783, %v784, %v780
  %v786 = vadd.s32 %v781, %v785
  %v787 = vadd.s32 %v786, 536870912
  %v788 = vshrl.u32 %v787, 30
  %v789 = vshll.u32 %v788, 30
  %v790 = vsub.s32 %v786, %v789
  %vm791 = vcmp.lt.s32.totalorder %v790, 0
  %v792 = vsub.s32 0, %v790
  %v793 = vsel %vm791, %v792, %v790
  %v794 = vclz %v793
  %v795 = vsub.s32 %v794, 2
  %vm796 = vcmp.gt.s32.totalorder 0, %v795
  %v797 = vsel %vm796, 0, %v795
  %v798 = vsub.s32 32, %v797
  %v799 = vshll.u32 %v790, %v797
  %v800 = vshrl.u32 %v782, %v798
  %v801 = vor.u32 %v799, %v800
  %v802 = vsub.s32 4294967266, %v797
  %v803 = vadd.s32 %v802, 127
  %v804 = vshll.u32 %v803, 23
  %v805 = vor.u32 4788187, %v804
  %v806 = vand.u32 2147483647, %v805
  %v808 = vcvt.s32.f32 %v801
  %v809 = vmul.f32 %v808, %v806
  %v810 = vxor.u32 %v809, 2147483648
  %v811 = vsel %vm690, %v810, %v809
  %v812 = vsub.s32 4, %v788
  %v813 = vsel %vm690, %v812, %v788
  %v814 = vsel %vm689, %v59, %v811
  %v815 = vsel %vm689, 0, %v813
  %v816 = vmul.f32 %v814, %v814
  %v817 = vmul.f32 %v816, -0.001358992
  %v818 = vadd.f32 %v817, 0.041655596
  %v819 = vmul.f32 %v816, %v818
  %v820 = vadd.f32 %v819, -0.4999988
  %v821 = vmul.f32 %v816, %v820
  %v822 = vadd.f32 1.0, %v821
  %v823 = vmul.f32 %v814, %v814
  %v824 = vmul.f32 %v823, -0.00019511016
  %v825 = vadd.f32 %v824, 0.008332121
  %v826 = vmul.f32 %v823, %v825
  %v827 = vadd.f32 %v826, -0.16666654
  %v828 = vmul.f32 %v823, %v827
  %v829 = vadd.f32 %v828, 1.0
  %v830 = vmul.f32 %v829, %v814
  %vm831 = vweird.f32 %v59
  %v832 = vand.u32 %v815, 3
  %vm833 = vcmp.lt.s32.totalorder %v832, 2
  %vm834 = vcmp.eq.s32.totalorder %v832, 0
  %v835 = vxor.u32 %v830, 2147483648
  %v836 = vsel %vm834, %v822, %v835
  %vm837 = vcmp.eq.s32.totalorder %v832, 2
  %v838 = vxor.u32 %v822, 2147483648
  %v839 = vsel %vm837, %v838, %v830
  %v840 = vsel %vm833, %v836, %v839
  %v841 = vsel %vm831, nan, %v840
  %v842 = vand.u32 2147483647, %v60
  %vm843 = vcmp.le.f32.partialorder %v842, 0.7853982
  %vm844 = vcmp.lt.s32.totalorder %v60, 0
  %v845 = vand.u32 %v60, 2139095040
  %v846 = vshrl.u32 %v845, 23
  %v847 = vsub.s32 %v846, 127
  %v848 = vand.u32 2147483647, %v60
  %v849 = vand.u32 %v848, 8388607
  %v850 = vor.u32 %v849, 8388608
  %v851 = vsub.s32 0, %v850
  %v852 = vadd.s32 %v847, 1
  %vm853 = vcmp.gt.s32.totalorder %v852, 0
  %v854 = vsel %vm853, %v852, 0
  %v855 = vshrl.u32 %v854, 5
  %v856 = vand.u32 %v854, 31
  %v857 = vsub.s32 32, %v856
  %v858 = vshrl.u32 683565275, %v857
  %v859 = vshll.u32 683565275, %v856
  %v860 = vshrl.u32 2475754826, %v857
  %v861 = vor.u32 %v859, %v860
  %v862 = vshll.u32 2475754826, %v856
  %v863 = vshrl.u32 2131351028, %v857
  %v864 = vor.u32 %v862, %v863
  %v865 = vshll.u32 2131351028, %v856
  %v866 = vshrl.u32 2102212464, %v857
  %v867 = vor.u32 %v865, %v866
  %v868 = vshll.u32 2102212464, %v856
  %v869 = vshrl.u32 920167782, %v857
  %v870 = vor.u32 %v868, %v869
  %v871 = vshll.u32 920167782, %v856
  %v872 = vshrl.u32 1326507024, %v857
  %v873 = vor.u32 %v871, %v872
  %vm874 = vcmp.lt.s32.totalorder %v855, 1
  %vm875 = vcmp.lt.s32.totalorder %v855, 2
  %vm876 = vcmp.lt.s32.totalorder %v855, 3
  %vm877 = vcmp.lt.s32.totalorder %v855, 4
  %v878 = vsel %vm874, %v858, %v861
  %v879 = vsel %vm877, %v867, 2102212464
  %v880 = vsel %vm876, %v864, %v879
  %v881 = vsel %vm875, %v878, %v880
  %v882 = vsel %vm874, %v861, %v864
  %v883 = vsel %vm877, %v870, 920167782
  %v884 = vsel %vm876, %v867, %v883
  %v885 = vsel %vm875, %v882, %v884
  %v886 = vsel %vm874, %v864, %v867
  %v887 = vsel %vm877, %v873, 1326507024
  %v888 = vsel %vm876, %v870, %v887
  %v889 = vsel %vm875, %v886, %v888
  %v890 = vshll.u32 %v850, 8
  %v891 = vand.u32 %v890, 65535
  %v892 = vshrl.u32 %v890, 16
  %v893 = vand.u32 %v889, 65535
  %v894 = vshrl.u32 %v889, 16
  %v895 = vmul.u32 %v891, %v893
  %v896 = vmul.u32 %v891, %v894
  %v897 = vmul.u32 %v892, %v893
  %v898 = vmul.u32 %v892, %v894
  %v899 = vshll.u32 %v896, 16
  %v900 = vshrl.u32 %v896, 16
  %v901 = vshll.u32 %v897, 16
  %v902 = vshrl.u32 %v897, 16
  %vm903 = vc.u32 %v895, %v899
  %v904 = vsel %vm903, 1, 0
  %v905 = vadd.s32 %v895, %v899
  %v906 = vadd.s32 %v898, %v904
  %vm907 = vc.u32 %v905, %v901
  %v908 = vsel %vm907, 1, 0
  %v909 = vadd.s32 %v905, %v901
  %v910 = vadd.s32 %v906, %v908
  %v911 = vadd.s32 %v910, %v900
  %v912 = vadd.s32 %v911, %v902
  %v913 = vand.u32 %v890, 65535
  %v914 = vshrl.u32 %v890, 16
  %v915 = vand.u32 %v885, 65535
  %v916 = vshrl.u32 %v885, 16
  %v917 = vmul.u32 %v913, %v915
  %v918 = vmul.u32 %v913, %v916
  %v919 = vmul.u32 %v914, %v915
  %v920 = vmul.u32 %v914, %v916
  %v921 = vshll.u32 %v918, 16
  %v922 = vshrl.u32 %v918, 16
  %v923 = vshll.u32 %v919, 16
  %v924 = vshrl.u32 %v919, 16
  %vm925 = vc.u32 %v917, %v921
  %v926 = vsel %vm925, 1, 0
  %v927 = vadd.s32 %v917, %v921
  %v928 = vadd.s32 %v920, %v926
  %vm929 = vc.u32 %v927, %v923
  %v930 = vsel %vm929, 1, 0
  %v931 = vadd.s32 %v927, %v923
  %v932 = vadd.s32 %v928, %v930
  %v933 = vadd.s32 %v932, %v922
  %v934 = vadd.s32 %v933, %v924
  %v935 = vmul.u32 %v890, %v881
  %v936 = vadd.s32 %v912, %v931
  %vm937 = vc.u32 %v912, %v931
  %v938 = vadd.s32 %v934, 1
  %v939 = vsel %vm937, %v938, %v934
  %v940 = vadd.s32 %v935, %v939
  %v941 = vadd.s32 %v940, 536870912
  %v942 = vshrl.u32 %v941, 30
  %v943 = vshll.u32 %v942, 30
  %v944 = vsub.s32 %v940, %v943
  %vm945 = vcmp.lt.s32.totalorder %v944, 0
  %v946 = vsub.s32 0, %v944
  %v947 = vsel %vm945, %v946, %v944
  %v948 = vclz %v947
  %v949 = vsub.s32 %v948, 2
  %vm950 = vcmp.gt.s32.totalorder 0, %v949
  %v951 = vsel %vm950, 0, %v949
  %v952 = vsub.s32 32, %v951
  %v953 = vshll.u32 %v944, %v951
  %v954 = vshrl.u32 %v936, %v952
  %v955 = vor.u32 %v953, %v954
  %v956 = vsub.s32 4294967266, %v951
  %v957 = vadd.s32 %v956, 127
  %v958 = vshll.u32 %v957, 23
  %v959 = vor.u32 4788187, %v958
  %v960 = vand.u32 2147483647, %v959
  %v962 = vcvt.s32.f32 %v955
  %v963 = vmul.f32 %v962, %v960
  %v964 = vxor.u32 %v963, 2147483648
  %v965 = vsel %vm844, %v964, %v963
  %v966 = vsub.s32 4, %v942
  %v967 = vsel %vm844, %v966, %v942
  %v968 = vsel %vm843, %v60, %v965
  %v969 = vsel %vm843, 0, %v967
  %v970 = vmul.f32 %v968, %v968
  %v971 = vmul.f32 %v970, -0.001358992
  %v972 = vadd.f32 %v971, 0.041655596
  %v973 = vmul.f32 %v970, %v972
  %v974 = vadd.f32 %v973, -0.4999988
  %v975 = vmul.f32 %v970, %v974
  %v976 = vadd.f32 1.0, %v975
  %v977 = vmul.f32 %v968, %v968
  %v978 = vmul.f32 %v977, -0.00019511016
  %v979 = vadd.f32 %v978, 0.008332121
  %v980 = vmul.f32 %v977, %v979
  %v981 = vadd.f32 %v980, -0.16666654
  %v982 = vmul.f32 %v977, %v981
  %v983 = vadd.f32 %v982, 1.0
  %v984 = vmul.f32 %v983, %v968
  %vm985 = vweird.f32 %v60
  %v986 = vand.u32 %v969, 3
  %vm987 = vcmp.lt.s32.totalorder %v986, 2
  %vm988 = vcmp.eq.s32.totalorder %v986, 0
  %v989 = vxor.u32 %v984, 2147483648
  %v990 = vsel %vm988, %v976, %v989
  %vm991 = vcmp.eq.s32.totalorder %v986, 2
  %v992 = vxor.u32 %v976, 2147483648
  %v993 = vsel %vm991, %v992, %v984
  %v994 = vsel %vm987, %v990, %v993
  %v995 = vsel %vm985, nan, %v994
  %v996 = vand.u32 2147483647, %v61
  %vm997 = vcmp.le.f32.partialorder %v996, 0.7853982
  %vm998 = vcmp.lt.s32.totalorder %v61, 0
  %v999 = vand.u32 %v61, 2139095040
  %v1000 = vshrl.u32 %v999, 23
  %v1001 = vsub.s32 %v1000, 127
  %v1002 = vand.u32 2147483647, %v61
  %v1003 = vand.u32 %v1002, 8388607
  %v1004 = vor.u32 %v1003, 8388608
  %v1005 = vsub.s32 0, %v1004
  %v1006 = vadd.s32 %v1001, 1
  %vm1007 = vcmp.gt.s32.totalorder %v1006, 0
  %v1008 = vsel %vm1007, %v1006, 0
  %v1009 = vshrl.u32 %v1008, 5
  %v1010 = vand.u32 %v1008, 31
  %v1011 = vsub.s32 32, %v1010
  %v1012 = vshrl.u32 683565275, %v1011
  %v1013 = vshll.u32 683565275, %v1010
  %v1014 = vshrl.u32 2475754826, %v1011
  %v1015 = vor.u32 %v1013, %v1014
  %v1016 = vshll.u32 2475754826, %v1010
  %v1017 = vshrl.u32 2131351028, %v1011
  %v1018 = vor.u32 %v1016, %v1017
  %v1019 = vshll.u32 2131351028, %v1010
  %v1020 = vshrl.u32 2102212464, %v1011
  %v1021 = vor.u32 %v1019, %v1020
  %v1022 = vshll.u32 2102212464, %v1010
  %v1023 = vshrl.u32 920167782, %v1011
  %v1024 = vor.u32 %v1022, %v1023
  %v1025 = vshll.u32 920167782, %v1010
  %v1026 = vshrl.u32 1326507024, %v1011
  %v1027 = vor.u32 %v1025, %v1026
  %vm1028 = vcmp.lt.s32.totalorder %v1009, 1
  %vm1029 = vcmp.lt.s32.totalorder %v1009, 2
  %vm1030 = vcmp.lt.s32.totalorder %v1009, 3
  %vm1031 = vcmp.lt.s32.totalorder %v1009, 4
  %v1032 = vsel %vm1028, %v1012, %v1015
  %v1033 = vsel %vm1031, %v1021, 2102212464
  %v1034 = vsel %vm1030, %v1018, %v1033
  %v1035 = vsel %vm1029, %v1032, %v1034
  %v1036 = vsel %vm1028, %v1015, %v1018
  %v1037 = vsel %vm1031, %v1024, 920167782
  %v1038 = vsel %vm1030, %v1021, %v1037
  %v1039 = vsel %vm1029, %v1036, %v1038
  %v1040 = vsel %vm1028, %v1018, %v1021
  %v1041 = vsel %vm1031, %v1027, 1326507024
  %v1042 = vsel %vm1030, %v1024, %v1041
  %v1043 = vsel %vm1029, %v1040, %v1042
  %v1044 = vshll.u32 %v1004, 8
  %v1045 = vand.u32 %v1044, 65535
  %v1046 = vshrl.u32 %v1044, 16
  %v1047 = vand.u32 %v1043, 65535
  %v1048 = vshrl.u32 %v1043, 16
  %v1049 = vmul.u32 %v1045, %v1047
  %v1050 = vmul.u32 %v1045, %v1048
  %v1051 = vmul.u32 %v1046, %v1047
  %v1052 = vmul.u32 %v1046, %v1048
  %v1053 = vshll.u32 %v1050, 16
  %v1054 = vshrl.u32 %v1050, 16
  %v1055 = vshll.u32 %v1051, 16
  %v1056 = vshrl.u32 %v1051, 16
  %vm1057 = vc.u32 %v1049, %v1053
  %v1058 = vsel %vm1057, 1, 0
  %v1059 = vadd.s32 %v1049, %v1053
  %v1060 = vadd.s32 %v1052, %v1058
  %vm1061 = vc.u32 %v1059, %v1055
  %v1062 = vsel %vm1061, 1, 0
  %v1063 = vadd.s32 %v1059, %v1055
  %v1064 = vadd.s32 %v1060, %v1062
  %v1065 = vadd.s32 %v1064, %v1054
  %v1066 = vadd.s32 %v1065, %v1056
  %v1067 = vand.u32 %v1044, 65535
  %v1068 = vshrl.u32 %v1044, 16
  %v1069 = vand.u32 %v1039, 65535
  %v1070 = vshrl.u32 %v1039, 16
  %v1071 = vmul.u32 %v1067, %v1069
  %v1072 = vmul.u32 %v1067, %v1070
  %v1073 = vmul.u32 %v1068, %v1069
  %v1074 = vmul.u32 %v1068, %v1070
  %v1075 = vshll.u32 %v1072, 16
  %v1076 = vshrl.u32 %v1072, 16
  %v1077 = vshll.u32 %v1073, 16
  %v1078 = vshrl.u32 %v1073, 16
  %vm1079 = vc.u32 %v1071, %v1075
  %v1080 = vsel %vm1079, 1, 0
  %v1081 = vadd.s32 %v1071, %v1075
  %v1082 = vadd.s32 %v1074, %v1080
  %vm1083 = vc.u32 %v1081, %v1077
  %v1084 = vsel %vm1083, 1, 0
  %v1085 = vadd.s32 %v1081, %v1077
  %v1086 = vadd.s32 %v1082, %v1084
  %v1087 = vadd.s32 %v1086, %v1076
  %v1088 = vadd.s32 %v1087, %v1078
  %v1089 = vmul.u32 %v1044, %v1035
  %v1090 = vadd.s32 %v1066, %v1085
  %vm1091 = vc.u32 %v1066, %v1085
  %v1092 = vadd.s32 %v1088, 1
  %v1093 = vsel %vm1091, %v1092, %v1088
  %v1094 = vadd.s32 %v1089, %v1093
  %v1095 = vadd.s32 %v1094, 536870912
  %v1096 = vshrl.u32 %v1095, 30
  %v1097 = vshll.u32 %v1096, 30
  %v1098 = vsub.s32 %v1094, %v1097
  %vm1099 = vcmp.lt.s32.totalorder %v1098, 0
  %v1100 = vsub.s32 0, %v1098
  %v1101 = vsel %vm1099, %v1100, %v1098
  %v1102 = vclz %v1101
  %v1103 = vsub.s32 %v1102, 2
  %vm1104 = vcmp.gt.s32.totalorder 0, %v1103
  %v1105 = vsel %vm1104, 0, %v1103
  %v1106 = vsub.s32 32, %v1105
  %v1107 = vshll.u32 %v1098, %v1105
  %v1108 = vshrl.u32 %v1090, %v1106
  %v1109 = vor.u32 %v1107, %v1108
  %v1110 = vsub.s32 4294967266, %v1105
  %v1111 = vadd.s32 %v1110, 127
  %v1112 = vshll.u32 %v1111, 23
  %v1113 = vor.u32 4788187, %v1112
  %v1114 = vand.u32 2147483647, %v1113
  %v1116 = vcvt.s32.f32 %v1109
  %v1117 = vmul.f32 %v1116, %v1114
  %v1118 = vxor.u32 %v1117, 2147483648
  %v1119 = vsel %vm998, %v1118, %v1117
  %v1120 = vsub.s32 4, %v1096
  %v1121 = vsel %vm998, %v1120, %v1096
  %v1122 = vsel %vm997, %v61, %v1119
  %v1123 = vsel %vm997, 0, %v1121
  %v1124 = vmul.f32 %v1122, %v1122
  %v1125 = vmul.f32 %v1124, -0.001358992
  %v1126 = vadd.f32 %v1125, 0.041655596
  %v1127 = vmul.f32 %v1124, %v1126
  %v1128 = vadd.f32 %v1127, -0.4999988
  %v1129 = vmul.f32 %v1124, %v1128
  %v1130 = vadd.f32 1.0, %v1129
  %v1131 = vmul.f32 %v1122, %v1122
  %v1132 = vmul.f32 %v1131, -0.00019511016
  %v1133 = vadd.f32 %v1132, 0.008332121
  %v1134 = vmul.f32 %v1131, %v1133
  %v1135 = vadd.f32 %v1134, -0.16666654
  %v1136 = vmul.f32 %v1131, %v1135
  %v1137 = vadd.f32 %v1136, 1.0
  %v1138 = vmul.f32 %v1137, %v1122
  %vm1139 = vweird.f32 %v61
  %v1140 = vand.u32 %v1123, 3
  %vm1141 = vcmp.lt.s32.totalorder %v1140, 2
  %vm1142 = vcmp.eq.s32.totalorder %v1140, 0
  %v1143 = vxor.u32 %v1138, 2147483648
  %v1144 = vsel %vm1142, %v1130, %v1143
  %vm1145 = vcmp.eq.s32.totalorder %v1140, 2
  %v1146 = vxor.u32 %v1130, 2147483648
  %v1147 = vsel %vm1145, %v1146, %v1138
  %v1148 = vsel %vm1141, %v1144, %v1147
  %v1149 = vsel %vm1139, nan, %v1148
  %v1150 = vand.u32 2147483647, %v62
  %vm1151 = vcmp.le.f32.partialorder %v1150, 0.7853982
  %vm1152 = vcmp.lt.s32.totalorder %v62, 0
  %v1153 = vand.u32 %v62, 2139095040
  %v1154 = vshrl.u32 %v1153, 23
  %v1155 = vsub.s32 %v1154, 127
  %v1156 = vand.u32 2147483647, %v62
  %v1157 = vand.u32 %v1156, 8388607
  %v1158 = vor.u32 %v1157, 8388608
  %v1159 = vsub.s32 0, %v1158
  %v1160 = vadd.s32 %v1155, 1
  %vm1161 = vcmp.gt.s32.totalorder %v1160, 0
  %v1162 = vsel %vm1161, %v1160, 0
  %v1163 = vshrl.u32 %v1162, 5
  %v1164 = vand.u32 %v1162, 31
  %v1165 = vsub.s32 32, %v1164
  %v1166 = vshrl.u32 683565275, %v1165
  %v1167 = vshll.u32 683565275, %v1164
  %v1168 = vshrl.u32 2475754826, %v1165
  %v1169 = vor.u32 %v1167, %v1168
  %v1170 = vshll.u32 2475754826, %v1164
  %v1171 = vshrl.u32 2131351028, %v1165
  %v1172 = vor.u32 %v1170, %v1171
  %v1173 = vshll.u32 2131351028, %v1164
  %v1174 = vshrl.u32 2102212464, %v1165
  %v1175 = vor.u32 %v1173, %v1174
  %v1176 = vshll.u32 2102212464, %v1164
  %v1177 = vshrl.u32 920167782, %v1165
  %v1178 = vor.u32 %v1176, %v1177
  %v1179 = vshll.u32 920167782, %v1164
  %v1180 = vshrl.u32 1326507024, %v1165
  %v1181 = vor.u32 %v1179, %v1180
  %vm1182 = vcmp.lt.s32.totalorder %v1163, 1
  %vm1183 = vcmp.lt.s32.totalorder %v1163, 2
  %vm1184 = vcmp.lt.s32.totalorder %v1163, 3
  %vm1185 = vcmp.lt.s32.totalorder %v1163, 4
  %v1186 = vsel %vm1182, %v1166, %v1169
  %v1187 = vsel %vm1185, %v1175, 2102212464
  %v1188 = vsel %vm1184, %v1172, %v1187
  %v1189 = vsel %vm1183, %v1186, %v1188
  %v1190 = vsel %vm1182, %v1169, %v1172
  %v1191 = vsel %vm1185, %v1178, 920167782
  %v1192 = vsel %vm1184, %v1175, %v1191
  %v1193 = vsel %vm1183, %v1190, %v1192
  %v1194 = vsel %vm1182, %v1172, %v1175
  %v1195 = vsel %vm1185, %v1181, 1326507024
  %v1196 = vsel %vm1184, %v1178, %v1195
  %v1197 = vsel %vm1183, %v1194, %v1196
  %v1198 = vshll.u32 %v1158, 8
  %v1199 = vand.u32 %v1198, 65535
  %v1200 = vshrl.u32 %v1198, 16
  %v1201 = vand.u32 %v1197, 65535
  %v1202 = vshrl.u32 %v1197, 16
  %v1203 = vmul.u32 %v1199, %v1201
  %v1204 = vmul.u32 %v1199, %v1202
  %v1205 = vmul.u32 %v1200, %v1201
  %v1206 = vmul.u32 %v1200, %v1202
  %v1207 = vshll.u32 %v1204, 16
  %v1208 = vshrl.u32 %v1204, 16
  %v1209 = vshll.u32 %v1205, 16
  %v1210 = vshrl.u32 %v1205, 16
  %vm1211 = vc.u32 %v1203, %v1207
  %v1212 = vsel %vm1211, 1, 0
  %v1213 = vadd.s32 %v1203, %v1207
  %v1214 = vadd.s32 %v1206, %v1212
  %vm1215 = vc.u32 %v1213, %v1209
  %v1216 = vsel %vm1215, 1, 0
  %v1217 = vadd.s32 %v1213, %v1209
  %v1218 = vadd.s32 %v1214, %v1216
  %v1219 = vadd.s32 %v1218, %v1208
  %v1220 = vadd.s32 %v1219, %v1210
  %v1221 = vand.u32 %v1198, 65535
  %v1222 = vshrl.u32 %v1198, 16
  %v1223 = vand.u32 %v1193, 65535
  %v1224 = vshrl.u32 %v1193, 16
  %v1225 = vmul.u32 %v1221, %v1223
  %v1226 = vmul.u32 %v1221, %v1224
  %v1227 = vmul.u32 %v1222, %v1223
  %v1228 = vmul.u32 %v1222, %v1224
  %v1229 = vshll.u32 %v1226, 16
  %v1230 = vshrl.u32 %v1226, 16
  %v1231 = vshll.u32 %v1227, 16
  %v1232 = vshrl.u32 %v1227, 16
  %vm1233 = vc.u32 %v1225, %v1229
  %v1234 = vsel %vm1233, 1, 0
  %v1235 = vadd.s32 %v1225, %v1229
  %v1236 = vadd.s32 %v1228, %v1234
  %vm1237 = vc.u32 %v1235, %v1231
  %v1238 = vsel %vm1237, 1, 0
  %v1239 = vadd.s32 %v1235, %v1231
  %v1240 = vadd.s32 %v1236, %v1238
  %v1241 = vadd.s32 %v1240, %v1230
  %v1242 = vadd.s32 %v1241, %v1232
  %v1243 = vmul.u32 %v1198, %v1189
  %v1244 = vadd.s32 %v1220, %v1239
  %vm1245 = vc.u32 %v1220, %v1239
  %v1246 = vadd.s32 %v1242, 1
  %v1247 = vsel %vm1245, %v1246, %v1242
  %v1248 = vadd.s32 %v1243, %v1247
  %v1249 = vadd.s32 %v1248, 536870912
  %v1250 = vshrl.u32 %v1249, 30
  %v1251 = vshll.u32 %v1250, 30
  %v1252 = vsub.s32 %v1248, %v1251
  %vm1253 = vcmp.lt.s32.totalorder %v1252, 0
  %v1254 = vsub.s32 0, %v1252
  %v1255 = vsel %vm1253, %v1254, %v1252
  %v1256 = vclz %v1255
  %v1257 = vsub.s32 %v1256, 2
  %vm1258 = vcmp.gt.s32.totalorder 0, %v1257
  %v1259 = vsel %vm1258, 0, %v1257
  %v1260 = vsub.s32 32, %v1259
  %v1261 = vshll.u32 %v1252, %v1259
  %v1262 = vshrl.u32 %v1244, %v1260
  %v1263 = vor.u32 %v1261, %v1262
  %v1264 = vsub.s32 4294967266, %v1259
  %v1265 = vadd.s32 %v1264, 127
  %v1266 = vshll.u32 %v1265, 23
  %v1267 = vor.u32 4788187, %v1266
  %v1268 = vand.u32 2147483647, %v1267
  %v1270 = vcvt.s32.f32 %v1263
  %v1271 = vmul.f32 %v1270, %v1268
  %v1272 = vxor.u32 %v1271, 2147483648
  %v1273 = vsel %vm1152, %v1272, %v1271
  %v1274 = vsub.s32 4, %v1250
  %v1275 = vsel %vm1152, %v1274, %v1250
  %v1276 = vsel %vm1151, %v62, %v1273
  %v1277 = vsel %vm1151, 0, %v1275
  %v1278 = vmul.f32 %v1276, %v1276
  %v1279 = vmul.f32 %v1278, -0.001358992
  %v1280 = vadd.f32 %v1279, 0.041655596
  %v1281 = vmul.f32 %v1278, %v1280
  %v1282 = vadd.f32 %v1281, -0.4999988
  %v1283 = vmul.f32 %v1278, %v1282
  %v1284 = vadd.f32 1.0, %v1283
  %v1285 = vmul.f32 %v1276, %v1276
  %v1286 = vmul.f32 %v1285, -0.00019511016
  %v1287 = vadd.f32 %v1286, 0.008332121
  %v1288 = vmul.f32 %v1285, %v1287
  %v1289 = vadd.f32 %v1288, -0.16666654
  %v1290 = vmul.f32 %v1285, %v1289
  %v1291 = vadd.f32 %v1290, 1.0
  %v1292 = vmul.f32 %v1291, %v1276
  %vm1293 = vweird.f32 %v62
  %v1294 = vand.u32 %v1277, 3
  %vm1295 = vcmp.lt.s32.totalorder %v1294, 2
  %vm1296 = vcmp.eq.s32.totalorder %v1294, 0
  %v1297 = vxor.u32 %v1292, 2147483648
  %v1298 = vsel %vm1296, %v1284, %v1297
  %vm1299 = vcmp.eq.s32.totalorder %v1294, 2
  %v1300 = vxor.u32 %v1284, 2147483648
  %v1301 = vsel %vm1299, %v1300, %v1292
  %v1302 = vsel %vm1295, %v1298, %v1301
  %v1303 = vsel %vm1293, nan, %v1302
  %1304 = vst.msk [vmem:[%s4 + $0x10] sm:$0xff] %vm683, %v841
  %1305 = vst.msk [vmem:[%s4 + $0x18] sm:$0xff] %vm683, %v995
  %1306 = vst.msk [vmem:[%s4 + $0x30] sm:$0xff] %vm683, %v1149
  %1307 = vst.msk [vmem:[%s4 + $0x38] sm:$0xff] %vm683, %v1303
  // Predicated region
  $region18: #{tpu_custom_call.1} parent=0 // pred_check
    _
  $region19: #{tpu_custom_call.1} parent=0 // pred_check_branch
    %1309 = sbr.rel (0) target = $region21
  $region20: #{tpu_custom_call.1} parent=0 // pred_region
    _
  $region21: #{tpu_custom_call.1} parent=0 // pred_fallthru
    _
  // Predicated region
  $region22: #{tpu_custom_call.1} parent=0 // pred_check
    _
  $region23: #{tpu_custom_call.1} parent=0 // pred_check_branch
    %1311 = sbr.rel (0) target = $region25
  $region24: #{tpu_custom_call.1} parent=0 // pred_region
    _
  $region25: #{tpu_custom_call.1} parent=0 // pred_fallthru
    _

</llo_original>
